<compile_context>
chip_gen: v5e
topology: v5e:2x2
jax: 0.10.0
libtpu: 0.0.40
codegen_flags: <defaults>
</compile_context>

<pallas_src>
import functools

import jax
import jax.numpy as jnp
from jax.experimental import pallas as pl
from jax.experimental.pallas import tpu as pltpu


def _round_up(n: int, m: int) -> int:
    return ((n + m - 1) // m) * m


def linear_kernel(x_ref, wt_ref, b_ref, o_ref):
    # x_ref: (TM, D_in), wt_ref: (D_in, D_out_p), b_ref: (1, D_out_p)
    # Plain matmul (weight already transposed host-side) -> MXU, f32 accumulate.
    acc = jnp.dot(x_ref[...], wt_ref[...], preferred_element_type=jnp.float32)
    o_ref[...] = (acc + b_ref[...].astype(jnp.float32)).astype(o_ref.dtype)


def prepare_linear_params(weight, bias, lane=128):
    """One-time host-side prep (weight is static, so this is free):
    transpose weight (D_out, D_in) -> (D_in, D_out) and zero-pad the output dim
    to a lane-dense multiple of 128. Returns (wt_padded, bias_padded_2d, d_out)."""
    d_out, d_in = weight.shape
    d_out_p = _round_up(d_out, lane)
    wt_p = jnp.zeros((d_in, d_out_p), weight.dtype).at[:, :d_out].set(weight.T)
    b_p = jnp.zeros((1, d_out_p), bias.dtype).at[:, :d_out].set(bias)
    return wt_p, b_p, d_out


@functools.partial(jax.jit, static_argnames=("d_out", "block_m"))
def linear_forward_prepared(x, wt_p, b_p, *, d_out, block_m=256):
    """x: (B, D_in), wt_p: (D_in, D_out_p), b_p: (1, D_out_p) -> (B, d_out)."""
    B, d_in = x.shape
    d_in_w, d_out_p = wt_p.shape
    assert d_in == d_in_w, "input feature dim mismatch"

    # Batch tiling: TM multiple of 8; pad batch so TM divides it evenly.
    tm = min(_round_up(B, 8), block_m)
    b_pad = _round_up(B, tm)
    if b_pad != B:
        x = jnp.pad(x, ((0, b_pad - B), (0, 0)))
    grid_m = b_pad // tm

    itemsize = jnp.dtype(x.dtype).itemsize
    cost = pl.CostEstimate(
        flops=2 * b_pad * d_in * d_out_p,
        transcendentals=0,
        bytes_accessed=(x.size + wt_p.size + b_p.size + b_pad * d_out_p) * itemsize,
    )

    out = pl.pallas_call(
        linear_kernel,
        out_shape=jax.ShapeDtypeStruct((b_pad, d_out_p), x.dtype),
        grid_spec=pltpu.PrefetchScalarGridSpec(
            num_scalar_prefetch=0,
            grid=(grid_m,),
            in_specs=[
                # x tiles walk the batch axis; D_in kept whole (full-dim block).
                pl.BlockSpec((tm, d_in), lambda i: (i, 0)),
                # Constant index_map: weight/bias stay VMEM-resident across steps.
                pl.BlockSpec((d_in, d_out_p), lambda i: (0, 0)),
                pl.BlockSpec((1, d_out_p), lambda i: (0, 0)),
            ],
            out_specs=pl.BlockSpec((tm, d_out_p), lambda i: (i, 0)),
        ),
        compiler_params=pltpu.CompilerParams(
            # Independent batch tiles -> parallel (uses v7x's 2nd TensorCore).
            dimension_semantics=("parallel",)),
        cost_estimate=cost,
    )(x, wt_p, b_p)

    # Strip batch padding and the lane padding of the output dim.
    return out[:B, :d_out]


def linear_forward(x, weight, bias, *, block_m=256):
    """Convenience wrapper taking PyTorch-layout params: weight (D_out, D_in), bias (D_out,)."""
    wt_p, b_p, d_out = prepare_linear_params(weight, bias)
    return linear_forward_prepared(x, wt_p, b_p, d_out=d_out, block_m=block_m)


def init_linear_params(key, input_dim, output_dim, dtype=jnp.float32):
    """Deterministic init mirroring nn.Linear default: U(-1/sqrt(fan_in), 1/sqrt(fan_in))."""
    kw, kb = jax.random.split(key)
    bound = 1.0 / jnp.sqrt(jnp.array(input_dim, dtype))
    weight = jax.random.uniform(kw, (output_dim, input_dim), dtype,
                                minval=-bound, maxval=bound)
    bias = jax.random.uniform(kb, (output_dim,), dtype,
                              minval=-bound, maxval=bound)
    return weight, bias


if __name__ == "__main__":
    key = jax.random.PRNGKey(0)
    k_x, k_p, k_x2 = jax.random.split(key, 3)

    batch = 8
    input_dim = 32
    output_dim = 16

    x = jax.random.normal(k_x, (batch, input_dim), jnp.float32)
    weight, bias = init_linear_params(k_p, input_dim, output_dim)

    # Case 1: small inference-style batch (single grid step).
    out = linear_forward(x, weight, bias)
    jax.block_until_ready(out)
    ref = x @ weight.T + bias
    assert out.shape == (batch, output_dim)
    assert jnp.allclose(out, ref, atol=1e-5, rtol=1e-5)

    # Case 2: ragged batch + multi-step parallel grid (exercises batch tiling & padding).
    x2 = jax.random.normal(k_x2, (20, input_dim), jnp.float32)
    out2 = linear_forward(x2, weight, bias, block_m=8)   # tm=8 -> grid of 3 batch tiles
    jax.block_until_ready(out2)
    ref2 = x2 @ weight.T + bias
    assert out2.shape == (20, output_dim)
    assert jnp.allclose(out2, ref2, atol=1e-5, rtol=1e-5)

    print("KERNEL_OK")
</pallas_src>

<mosaic_0001>
module attributes {stable_mosaic.version = 11 : i64} {
  func.func @linear_kernel(%arg0: i32, %arg1: memref<8x32xf32, #tpu.memory_space<vmem>>, %arg2: memref<32x128xf32, #tpu.memory_space<vmem>>, %arg3: memref<1x128xf32, #tpu.memory_space<vmem>>, %arg4: memref<8x128xf32, #tpu.memory_space<vmem>>) attributes {dimension_semantics = [#tpu.dimension_semantics<parallel>], iteration_bounds = array<i64: 1>, scalar_prefetch = 0 : i64, scratch_operands = 0 : i64, tpu.core_type = #tpu.core_type<tc>, window_params = [{transform_indices = @transform_0, window_bounds = array<i64: 8, 32>}, {pipeline_mode = #tpu.pipeline_mode<synchronous>, transform_indices = @transform_1, window_bounds = array<i64: 32, 128>}, {pipeline_mode = #tpu.pipeline_mode<synchronous>, transform_indices = @transform_2, window_bounds = array<i64: 1, 128>}, {transform_indices = @transform_3, window_bounds = array<i64: 8, 128>}]} {
    %c0 = arith.constant 0 : index
    %c0_0 = arith.constant 0 : index
    %0 = vector.load %arg1[%c0, %c0_0] : memref<8x32xf32, #tpu.memory_space<vmem>>, vector<8x32xf32>
    %c0_1 = arith.constant 0 : index
    %c0_2 = arith.constant 0 : index
    %1 = vector.load %arg2[%c0_1, %c0_2] : memref<32x128xf32, #tpu.memory_space<vmem>>, vector<32x128xf32>
    %cst = arith.constant dense<0.000000e+00> : vector<8x128xf32>
    %2 = tpu.matmul %0, %1, %cst {dimension_numbers = #tpu.dot_dimension_numbers<[1], [0], [0], [1], [0, 0, 1, 1], [], []>} : vector<8x32xf32>, vector<32x128xf32>, vector<8x128xf32> -> vector<8x128xf32>
    %c0_3 = arith.constant 0 : index
    %c0_4 = arith.constant 0 : index
    %3 = vector.load %arg3[%c0_3, %c0_4] : memref<1x128xf32, #tpu.memory_space<vmem>>, vector<1x128xf32>
    %4 = vector.broadcast %3 : vector<1x128xf32> to vector<8x128xf32>
    %5 = arith.addf %2, %4 : vector<8x128xf32>
    %c0_5 = arith.constant 0 : index
    %c0_6 = arith.constant 0 : index
    %6 = vector.load %arg4[%c0_5, %c0_6] : memref<8x128xf32, #tpu.memory_space<vmem>>, vector<8x128xf32>
    tpu.vector_store %arg4[%c0_5, %c0_6], %5 {strides = array<i32>} : memref<8x128xf32, #tpu.memory_space<vmem>>, vector<8x128xf32>,
    return
  }
  func.func @transform_0(%arg0: i32) -> (i32, i32) {
    %c0_i32 = arith.constant 0 : i32
    %c0_i32_0 = arith.constant 0 : i32
    return %arg0, %c0_i32 : i32, i32
  }
  func.func @transform_1(%arg0: i32) -> (i32, i32) {
    %c0_i32 = arith.constant 0 : i32
    %c0_i32_0 = arith.constant 0 : i32
    %c0_i32_1 = arith.constant 0 : i32
    return %c0_i32, %c0_i32_0 : i32, i32
  }
  func.func @transform_2(%arg0: i32) -> (i32, i32) {
    %c0_i32 = arith.constant 0 : i32
    %c0_i32_0 = arith.constant 0 : i32
    %c0_i32_1 = arith.constant 0 : i32
    return %c0_i32, %c0_i32_0 : i32, i32
  }
  func.func @transform_3(%arg0: i32) -> (i32, i32) {
    %c0_i32 = arith.constant 0 : i32
    %c0_i32_0 = arith.constant 0 : i32
    return %arg0, %c0_i32 : i32, i32
  }
}

</mosaic_0001>

<llo_original>
// kernel: linear_forward_prepared.1
$region0: #{linear_forward_prepared.1}
  #allocation0 [shape = 'u32[]', space=smem, size = 0x4, offset = 0x4, fixed_abs, tag = 'smem constant byte address 0x4 - core index']
  #allocation1 [shape = 'u32[72,128]{1,0:T(1,128)}', space=vmem, size = 0x9000, scoped, tag = 'internal scratch']
  %s0 = inlined_call_operand.hbm [shape: f32[8,32], index: 0, kind: input, shape index: {}]
  %s1 = inlined_call_operand.hbm [shape: f32[32,128], index: 1, kind: input, shape index: {}]
  %s2 = inlined_call_operand.vmem [shape: f32[1,128], index: 2, kind: input, shape index: {}]
  %s3 = inlined_call_operand.hbm [shape: f32[8,128], index: 3, kind: output, shape index: {}]
  %s4 = sld [smem:[#allocation0]]
  $region30: #{linear_forward_prepared.1} parent=0
    _
  %s6 = ssub.s32 1, %s4
  %s7 = scalar_select 0, %s6, %s4
  $region1: #{linear_forward_prepared.1} parent=0
    #allocation2 [shape = 'u8[4096]{0}', space=vmem, size = 0x1000, scoped, tag = 'input window, operand 0, single buffered']
    #allocation3 [shape = 's32[1]{0}', space=sflag, size = 0x4, scoped, tag = 'scoped memory for linear_forward_prepared.1']
    #allocation4 [shape = 's32[1]{0}', space=sflag, size = 0x4, scoped, tag = 'scoped memory for linear_forward_prepared.1']
    #allocation5 [shape = 'u8[16384]{0}', space=vmem, size = 0x4000, scoped, tag = 'input window, operand 1, single buffered']
    #allocation6 [shape = 's32[1]{0}', space=sflag, size = 0x4, scoped, tag = 'scoped memory for linear_forward_prepared.1']
    #allocation7 [shape = 'u8[4096]{0}', space=vmem, size = 0x1000, scoped, tag = 'output window, operand 0, single buffered']
    %8 = vsyncpa [#allocation3], 0
    %9 = vsyncpa [#allocation6], 0
    %10 = vsyncpa [#allocation4], 0
    // Predicated region
    $region2: #{linear_forward_prepared.1} parent=1 // pred_check
      _
    $region3: #{linear_forward_prepared.1} parent=1 // pred_check_branch
      %12 = sbr.rel (0) target = $region5
    $region4: #{linear_forward_prepared.1} parent=1 // pred_region
      %14 = vsyncadd [#allocation3], 0
      %s16 = sshll.u32 %s0, 4
      %s17 = int_to_ptr.hbm [resolvable:$true] %s16
      %s18 = sshll.u32 [#allocation2], 4
      %s19 = int_to_ptr.vmem [resolvable:$true] %s18
      %21 = dma.hbm_to_vmem [thread:$0]  %s17, 128, %s19, [#allocation3]
    $region5: #{linear_forward_prepared.1} parent=1 // pred_fallthru
      _
    // Predicated region
    $region6: #{linear_forward_prepared.1} parent=1 // pred_check
      _
    $region7: #{linear_forward_prepared.1} parent=1 // pred_check_branch
      %23 = sbr.rel (0) target = $region9
    $region8: #{linear_forward_prepared.1} parent=1 // pred_region
      %25 = vsyncadd [#allocation6], 0
      %s26 = sshll.u32 %s1, 4
      %s27 = int_to_ptr.hbm [resolvable:$true] %s26
      %s28 = sshll.u32 [#allocation5], 4
      %s29 = int_to_ptr.vmem [resolvable:$true] %s28
      %34 = dma.hbm_to_vmem [thread:$0]  %s27, 512, %s29, [#allocation6], 128, 128, 8
    $region9: #{linear_forward_prepared.1} parent=1 // pred_fallthru
      _
    // Predicated region
    $region10: #{linear_forward_prepared.1} parent=1 // pred_check
      _
    $region11: #{linear_forward_prepared.1} parent=1 // pred_check_branch
      %36 = sbr.rel (0) target = $region13
    $region12: #{linear_forward_prepared.1} parent=1 // pred_region
      _
    $region13: #{linear_forward_prepared.1} parent=1 // pred_fallthru
      _
    // Predicated region
    $region14: #{linear_forward_prepared.1} parent=1 // pred_check
      _
    $region15: #{linear_forward_prepared.1} parent=1 // pred_check_branch
      %38 = sbr.rel (0) target = $region17
    $region16: #{linear_forward_prepared.1} parent=1 // pred_region
      %40 = dma.done [#allocation3], 128
    $region17: #{linear_forward_prepared.1} parent=1 // pred_fallthru
      _
    // Predicated region
    $region18: #{linear_forward_prepared.1} parent=1 // pred_check
      _
    $region19: #{linear_forward_prepared.1} parent=1 // pred_check_branch
      %42 = sbr.rel (0) target = $region21
    $region20: #{linear_forward_prepared.1} parent=1 // pred_region
      %44 = dma.done [#allocation6], 512
    $region21: #{linear_forward_prepared.1} parent=1 // pred_fallthru
      _
    %v45 = vld [vmem:[#allocation2] sm:$0xff]
    %v46 = vld [vmem:[#allocation5] sm:$0xff]
    %v47 = vld [vmem:[#allocation5 + $0x8] sm:$0xff]
    %v48 = vld [vmem:[#allocation5 + $0x10] sm:$0xff]
    %v49 = vld [vmem:[#allocation5 + $0x18] sm:$0xff]
    %v50 = vld [vmem:[%s2] sm:$0x1]
    %v52 = vperm.slane %v50, 0
    %vm54 = vcmask 261120
    %v56 = vsel %vm54, %v45, 0
    %58 = vmatpush.msra.mxu0 0.0
    %59 = vmatpush.msra.mxu0 0.0
    %60 = vmatpush.msra.mxu0 0.0
    %61 = vmatpush.msra.mxu0 0.0
    %62 = vmatpush.msra.mxu0 0.0
    %63 = vmatpush.msra.mxu0 0.0
    %64 = vmatpush.msra.mxu0 0.0
    %65 = vmatpush.msra.mxu0 0.0
    %66 = vmatpush.msra.mxu0 0.0
    %67 = vmatpush.msra.mxu0 0.0
    %68 = vmatpush.msra.mxu0 0.0
    %69 = vmatpush.msra.mxu0 0.0
    %70 = vmatpush.msra.mxu0 %v49
    %71 = vmatpush.msra.mxu0 %v48
    %72 = vmatpush.msra.mxu0 %v47
    %73 = vmatpush.msra.mxu0 %v46
    %74 = vmatmul.f32.gmra.mxu0 %v56
    %v75 = vpop.f32.mrf.mxu0
    %v76 = vadd.f32 %v52, %v75
    %77 = vdwg.mxu0
    %78 = vst [vmem:[#allocation7] sm:$0xff] %v76
    // Predicated region
    $region22: #{linear_forward_prepared.1} parent=1 // pred_check
      _
    $region23: #{linear_forward_prepared.1} parent=1 // pred_check_branch
      %80 = sbr.rel (0) target = $region25
    $region24: #{linear_forward_prepared.1} parent=1 // pred_region
      %82 = vsyncadd [#allocation4], 0
      %s84 = sshll.u32 [#allocation7], 4
      %s85 = int_to_ptr.vmem [resolvable:$true] %s84
      %s86 = sshll.u32 %s3, 4
      %s87 = int_to_ptr.hbm [resolvable:$true] %s86
      %89 = dma.vmem_to_hbm [thread:$0]  %s85, 128, %s87, [#allocation4]
    $region25: #{linear_forward_prepared.1} parent=1 // pred_fallthru
      _
    // Predicated region
    $region26: #{linear_forward_prepared.1} parent=1 // pred_check
      _
    $region27: #{linear_forward_prepared.1} parent=1 // pred_check_branch
      %91 = sbr.rel (0) target = $region29
    $region28: #{linear_forward_prepared.1} parent=1 // pred_region
      %93 = dma.done [#allocation4], 128
    $region29: #{linear_forward_prepared.1} parent=1 // pred_fallthru
      _
    %94 = vsyncpa [#allocation3], 1
    %95 = vsyncpa [#allocation6], 1
    %96 = vsyncpa [#allocation4], 1

</llo_original>
